<compile_context>
chip_gen: v5e
topology: v5e:2x2
jax: 0.10.0
libtpu: 0.0.40
codegen_flags: <defaults>
</compile_context>

<pallas_src>
import jax
import jax.numpy as jnp
from jax import lax
from jax.experimental import pallas as pl
from jax.experimental.pallas import tpu as pltpu


def kalman_kernel(x_ref, w_ref, bits_ref, o_ref):
    # MXU matmul, f32 accumulation.
    out = jnp.dot(x_ref[...], w_ref[...], preferred_element_type=jnp.float32)

    # Gaussian noise via full Box-Muller pair from raw uniform bits.
    bits = bits_ref[...]                      # (TM, Npad) uint32
    half = bits.shape[0] // 2
    exp_one = jnp.uint32(0x3F800000)
    # mantissa bit-trick: value in [1, 2), no int->float convert needed
    v1 = lax.bitcast_convert_type((bits[:half] >> 9) | exp_one, jnp.float32)
    v2 = lax.bitcast_convert_type((bits[half:] >> 9) | exp_one, jnp.float32)
    u1 = 2.0 - v1                             # (0, 1]  -> safe for log
    u2 = v2 - 1.0                             # [0, 1)
    r = jnp.sqrt(-2.0 * jnp.log(u1))
    theta = (2.0 * jnp.float32(jnp.pi)) * u2
    noise = jnp.concatenate([r * jnp.cos(theta), r * jnp.sin(theta)], axis=0)

    o_ref[...] = (out + noise).astype(o_ref.dtype)


def _round_up(x, m):
    return (x + m - 1) // m * m


def kalman_transition(inputs, weight, key):
    """inputs: (B, S, K) f32, weight: (K, N) f32, key: jax PRNG key -> (B, S, N) f32."""
    B, S, K = inputs.shape
    Kw, N = weight.shape
    assert K == Kw
    M = B * S

    LANE = 128
    K_pad = _round_up(K, LANE)
    N_pad = _round_up(N, LANE)
    TM = min(256, _round_up(M, 16))           # row tile; even halves for Box-Muller
    M_pad = _round_up(M, TM)
    grid = (M_pad // TM,)

    x2 = jnp.pad(inputs.reshape(M, K).astype(jnp.float32),
                 ((0, M_pad - M), (0, K_pad - K)))
    w2 = jnp.pad(weight.astype(jnp.float32),
                 ((0, K_pad - K), (0, N_pad - N)))
    # One uniform-bit draw per call (fresh noise per call, split in-kernel).
    bits = jax.random.bits(key, (M_pad, N_pad), dtype=jnp.uint32)

    out = pl.pallas_call(
        kalman_kernel,
        out_shape=jax.ShapeDtypeStruct((M_pad, N_pad), jnp.float32),
        grid=grid,
        in_specs=[
            pl.BlockSpec((TM, K_pad), lambda i: (i, 0)),
            pl.BlockSpec((K_pad, N_pad), lambda i: (0, 0)),   # weight stays resident
            pl.BlockSpec((TM, N_pad), lambda i: (i, 0)),
        ],
        out_specs=pl.BlockSpec((TM, N_pad), lambda i: (i, 0)),
        compiler_params=pltpu.CompilerParams(
            dimension_semantics=("parallel",)),
    )(x2, w2, bits)

    return out[:M, :N].reshape(B, S, N)


if __name__ == "__main__":
    key = jax.random.PRNGKey(0)
    k_x, k_w, k_noise = jax.random.split(key, 3)

    B, S, K, N = 2, 8, 32, 32   # small state-space / sequence sizes
    # Deterministic synthetic "pretrained Kalman" transition matrix
    # (original module loads a (in_features, out_features) matrix from file).
    weight = jax.random.normal(k_w, (K, N), dtype=jnp.float32) * 0.1
    x = jax.random.normal(k_x, (B, S, K), dtype=jnp.float32)

    y = kalman_transition(x, weight, k_noise)
    jax.block_until_ready(y)

    # sanity: residual (y - x @ w) should be ~N(0, 1) elementwise
    clean = jnp.einsum("bsk,kn->bsn", x, weight)
    resid = y - clean
    assert y.shape == (B, S, N)
    assert bool(jnp.isfinite(resid).all())
    m = float(jnp.mean(resid))
    s = float(jnp.std(resid))
    assert abs(m) < 0.3 and 0.6 < s < 1.4, (m, s)

    print("KERNEL_OK")
</pallas_src>

<mosaic_0001>
module attributes {stable_mosaic.version = 11 : i64} {
  func.func @kalman_kernel(%arg0: i32, %arg1: memref<16x128xf32, #tpu.memory_space<vmem>>, %arg2: memref<128x128xf32, #tpu.memory_space<vmem>>, %arg3: memref<16x128xi32, #tpu.memory_space<vmem>>, %arg4: memref<16x128xf32, #tpu.memory_space<vmem>>) attributes {dimension_semantics = [#tpu.dimension_semantics<parallel>], iteration_bounds = array<i64: 1>, scalar_prefetch = 0 : i64, scratch_operands = 0 : i64, tpu.core_type = #tpu.core_type<tc>, window_params = [{transform_indices = @transform_0, window_bounds = array<i64: 16, 128>}, {pipeline_mode = #tpu.pipeline_mode<synchronous>, transform_indices = @transform_1, window_bounds = array<i64: 128, 128>}, {transform_indices = @transform_2, window_bounds = array<i64: 16, 128>}, {transform_indices = @transform_3, window_bounds = array<i64: 16, 128>}]} {
    %c0 = arith.constant 0 : index
    %c0_0 = arith.constant 0 : index
    %0 = vector.load %arg1[%c0, %c0_0] : memref<16x128xf32, #tpu.memory_space<vmem>>, vector<16x128xf32>
    %c0_1 = arith.constant 0 : index
    %c0_2 = arith.constant 0 : index
    %1 = vector.load %arg2[%c0_1, %c0_2] : memref<128x128xf32, #tpu.memory_space<vmem>>, vector<128x128xf32>
    %cst = arith.constant dense<0.000000e+00> : vector<16x128xf32>
    %2 = tpu.matmul %0, %1, %cst {dimension_numbers = #tpu.dot_dimension_numbers<[1], [0], [0], [1], [0, 0, 1, 1], [], []>} : vector<16x128xf32>, vector<128x128xf32>, vector<16x128xf32> -> vector<16x128xf32>
    %c0_3 = arith.constant 0 : index
    %c0_4 = arith.constant 0 : index
    %3 = vector.load %arg3[%c0_3, %c0_4] : memref<16x128xi32, #tpu.memory_space<vmem>>, vector<16x128xi32>
    %4 = vector.extract_strided_slice %3 {offsets = [0, 0], sizes = [8, 128], strides = [1, 1]} : vector<16x128xi32> to vector<8x128xi32>
    %c9_i32 = arith.constant 9 : i32
    %5 = vector.broadcast %c9_i32 : i32 to vector<8x128xi32>
    %6 = arith.shrui %4, %5 : vector<8x128xi32>
    %c1065353216_i32 = arith.constant 1065353216 : i32
    %7 = vector.broadcast %c1065353216_i32 : i32 to vector<8x128xi32>
    %8 = arith.ori %6, %7 : vector<8x128xi32>
    %9 = tpu.bitcast %8 : vector<8x128xi32> -> vector<8x128xf32>
    %10 = vector.extract_strided_slice %3 {offsets = [8, 0], sizes = [8, 128], strides = [1, 1]} : vector<16x128xi32> to vector<8x128xi32>
    %c9_i32_5 = arith.constant 9 : i32
    %11 = vector.broadcast %c9_i32_5 : i32 to vector<8x128xi32>
    %12 = arith.shrui %10, %11 : vector<8x128xi32>
    %c1065353216_i32_6 = arith.constant 1065353216 : i32
    %13 = vector.broadcast %c1065353216_i32_6 : i32 to vector<8x128xi32>
    %14 = arith.ori %12, %13 : vector<8x128xi32>
    %15 = tpu.bitcast %14 : vector<8x128xi32> -> vector<8x128xf32>
    %cst_7 = arith.constant 2.000000e+00 : f32
    %16 = vector.broadcast %cst_7 : f32 to vector<8x128xf32>
    %17 = arith.subf %16, %9 : vector<8x128xf32>
    %cst_8 = arith.constant 1.000000e+00 : f32
    %18 = vector.broadcast %cst_8 : f32 to vector<8x128xf32>
    %19 = arith.subf %15, %18 : vector<8x128xf32>
    %20 = math.log %17 : vector<8x128xf32>
    %cst_9 = arith.constant -2.000000e+00 : f32
    %21 = vector.broadcast %cst_9 : f32 to vector<8x128xf32>
    %22 = arith.mulf %21, %20 : vector<8x128xf32>
    %23 = math.sqrt %22 : vector<8x128xf32>
    %cst_10 = arith.constant 2.000000e+00 : f32
    %cst_11 = arith.constant 3.14159274 : f32
    %24 = arith.mulf %cst_10, %cst_11 : f32
    %25 = vector.broadcast %24 : f32 to vector<8x128xf32>
    %26 = arith.mulf %25, %19 : vector<8x128xf32>
    %27 = math.cos %26 : vector<8x128xf32>
    %28 = arith.mulf %23, %27 : vector<8x128xf32>
    %29 = math.sin %26 : vector<8x128xf32>
    %30 = arith.mulf %23, %29 : vector<8x128xf32>
    %31 = tpu.concatenate %28, %30 in 0 : vector<8x128xf32>, vector<8x128xf32> -> vector<16x128xf32>
    %32 = arith.addf %2, %31 : vector<16x128xf32>
    %c0_12 = arith.constant 0 : index
    %c0_13 = arith.constant 0 : index
    %33 = vector.load %arg4[%c0_12, %c0_13] : memref<16x128xf32, #tpu.memory_space<vmem>>, vector<16x128xf32>
    tpu.vector_store %arg4[%c0_12, %c0_13], %32 {strides = array<i32>} : memref<16x128xf32, #tpu.memory_space<vmem>>, vector<16x128xf32>,
    return
  }
  func.func @transform_0(%arg0: i32) -> (i32, i32) {
    %c0_i32 = arith.constant 0 : i32
    %c0_i32_0 = arith.constant 0 : i32
    return %arg0, %c0_i32 : i32, i32
  }
  func.func @transform_1(%arg0: i32) -> (i32, i32) {
    %c0_i32 = arith.constant 0 : i32
    %c0_i32_0 = arith.constant 0 : i32
    %c0_i32_1 = arith.constant 0 : i32
    return %c0_i32, %c0_i32_0 : i32, i32
  }
  func.func @transform_2(%arg0: i32) -> (i32, i32) {
    %c0_i32 = arith.constant 0 : i32
    %c0_i32_0 = arith.constant 0 : i32
    return %arg0, %c0_i32 : i32, i32
  }
  func.func @transform_3(%arg0: i32) -> (i32, i32) {
    %c0_i32 = arith.constant 0 : i32
    %c0_i32_0 = arith.constant 0 : i32
    return %arg0, %c0_i32 : i32, i32
  }
}

</mosaic_0001>

<llo_original>
// kernel: tpu_custom_call.1
$region0: #{tpu_custom_call.1}
  #allocation0 [shape = 'u32[]', space=smem, size = 0x4, offset = 0x4, fixed_abs, tag = 'smem constant byte address 0x4 - core index']
  #allocation1 [shape = 'u32[72,128]{1,0:T(1,128)}', space=vmem, size = 0x9000, scoped, tag = 'internal scratch']
  %s0 = inlined_call_operand.hbm [shape: f32[16,128], index: 0, kind: input, shape index: {}]
  %s1 = inlined_call_operand.hbm [shape: f32[128,128], index: 1, kind: input, shape index: {}]
  %s2 = inlined_call_operand.hbm [shape: u32[16,128], index: 2, kind: input, shape index: {}]
  %s3 = inlined_call_operand.hbm [shape: f32[16,128], index: 3, kind: output, shape index: {}]
  %s4 = sld [smem:[#allocation0]]
  $region34: #{tpu_custom_call.1} parent=0
    _
  %s6 = ssub.s32 1, %s4
  %s7 = scalar_select 0, %s6, %s4
  $region1: #{tpu_custom_call.1} parent=0
    #allocation2 [shape = 'u8[8192]{0}', space=vmem, size = 0x2000, scoped, tag = 'input window, operand 0, single buffered']
    #allocation3 [shape = 's32[1]{0}', space=sflag, size = 0x4, scoped, tag = 'scoped memory for tpu_custom_call.1']
    #allocation4 [shape = 's32[1]{0}', space=sflag, size = 0x4, scoped, tag = 'scoped memory for tpu_custom_call.1']
    #allocation5 [shape = 'u8[65536]{0}', space=vmem, size = 0x10000, scoped, tag = 'input window, operand 1, single buffered']
    #allocation6 [shape = 's32[1]{0}', space=sflag, size = 0x4, scoped, tag = 'scoped memory for tpu_custom_call.1']
    #allocation7 [shape = 'u8[8192]{0}', space=vmem, size = 0x2000, scoped, tag = 'input window, operand 2, single buffered']
    #allocation8 [shape = 'u8[8192]{0}', space=vmem, size = 0x2000, scoped, tag = 'output window, operand 0, single buffered']
    %8 = vsyncpa [#allocation3], 0
    %9 = vsyncpa [#allocation6], 0
    %10 = vsyncpa [#allocation4], 0
    // Predicated region
    $region2: #{tpu_custom_call.1} parent=1 // pred_check
      _
    $region3: #{tpu_custom_call.1} parent=1 // pred_check_branch
      %12 = sbr.rel (0) target = $region5
    $region4: #{tpu_custom_call.1} parent=1 // pred_region
      %14 = vsyncadd [#allocation3], 0
      %s15 = sshll.u32 %s0, 4
      %s16 = int_to_ptr.hbm [resolvable:$true] %s15
      %s17 = sshll.u32 [#allocation2], 4
      %s18 = int_to_ptr.vmem [resolvable:$true] %s17
      %23 = dma.hbm_to_vmem [thread:$0]  %s16, 256, %s18, [#allocation3], 128, 128, 8
    $region5: #{tpu_custom_call.1} parent=1 // pred_fallthru
      _
    // Predicated region
    $region6: #{tpu_custom_call.1} parent=1 // pred_check
      _
    $region7: #{tpu_custom_call.1} parent=1 // pred_check_branch
      %25 = sbr.rel (0) target = $region9
    $region8: #{tpu_custom_call.1} parent=1 // pred_region
      %27 = vsyncadd [#allocation6], 0
      %s28 = sshll.u32 %s1, 4
      %s29 = int_to_ptr.hbm [resolvable:$true] %s28
      %s30 = sshll.u32 [#allocation5], 4
      %s31 = int_to_ptr.vmem [resolvable:$true] %s30
      %36 = dma.hbm_to_vmem [thread:$0]  %s29, 2048, %s31, [#allocation6], 128, 128, 8
    $region9: #{tpu_custom_call.1} parent=1 // pred_fallthru
      _
    // Predicated region
    $region10: #{tpu_custom_call.1} parent=1 // pred_check
      _
    $region11: #{tpu_custom_call.1} parent=1 // pred_check_branch
      %38 = sbr.rel (0) target = $region13
    $region12: #{tpu_custom_call.1} parent=1 // pred_region
      %40 = vsyncadd [#allocation6], 0
      %s41 = sshll.u32 %s2, 4
      %s42 = int_to_ptr.hbm [resolvable:$true] %s41
      %s43 = sshll.u32 [#allocation7], 4
      %s44 = int_to_ptr.vmem [resolvable:$true] %s43
      %49 = dma.hbm_to_vmem [thread:$0]  %s42, 256, %s44, [#allocation6], 128, 128, 8
    $region13: #{tpu_custom_call.1} parent=1 // pred_fallthru
      _
    // Predicated region
    $region14: #{tpu_custom_call.1} parent=1 // pred_check
      _
    $region15: #{tpu_custom_call.1} parent=1 // pred_check_branch
      %51 = sbr.rel (0) target = $region17
    $region16: #{tpu_custom_call.1} parent=1 // pred_region
      %53 = dma.done [#allocation3], 256
    $region17: #{tpu_custom_call.1} parent=1 // pred_fallthru
      _
    // Predicated region
    $region18: #{tpu_custom_call.1} parent=1 // pred_check
      _
    $region19: #{tpu_custom_call.1} parent=1 // pred_check_branch
      %55 = sbr.rel (0) target = $region21
    $region20: #{tpu_custom_call.1} parent=1 // pred_region
      %57 = dma.done [#allocation6], 2048
    $region21: #{tpu_custom_call.1} parent=1 // pred_fallthru
      _
    // Predicated region
    $region22: #{tpu_custom_call.1} parent=1 // pred_check
      _
    $region23: #{tpu_custom_call.1} parent=1 // pred_check_branch
      %59 = sbr.rel (0) target = $region25
    $region24: #{tpu_custom_call.1} parent=1 // pred_region
      %61 = dma.done [#allocation6], 256
    $region25: #{tpu_custom_call.1} parent=1 // pred_fallthru
      _
    %v62 = vld [vmem:[#allocation2] sm:$0xff]
    %v63 = vld [vmem:[#allocation2 + $0x8] sm:$0xff]
    %v64 = vld [vmem:[#allocation5] sm:$0xff]
    %v65 = vld [vmem:[#allocation5 + $0x8] sm:$0xff]
    %v66 = vld [vmem:[#allocation5 + $0x10] sm:$0xff]
    %v67 = vld [vmem:[#allocation5 + $0x18] sm:$0xff]
    %v68 = vld [vmem:[#allocation5 + $0x20] sm:$0xff]
    %v69 = vld [vmem:[#allocation5 + $0x28] sm:$0xff]
    %v70 = vld [vmem:[#allocation5 + $0x30] sm:$0xff]
    %v71 = vld [vmem:[#allocation5 + $0x38] sm:$0xff]
    %v72 = vld [vmem:[#allocation5 + $0x40] sm:$0xff]
    %v73 = vld [vmem:[#allocation5 + $0x48] sm:$0xff]
    %v74 = vld [vmem:[#allocation5 + $0x50] sm:$0xff]
    %v75 = vld [vmem:[#allocation5 + $0x58] sm:$0xff]
    %v76 = vld [vmem:[#allocation5 + $0x60] sm:$0xff]
    %v77 = vld [vmem:[#allocation5 + $0x68] sm:$0xff]
    %v78 = vld [vmem:[#allocation5 + $0x70] sm:$0xff]
    %v79 = vld [vmem:[#allocation5 + $0x78] sm:$0xff]
    %v80 = vld [vmem:[#allocation7] sm:$0xff]
    %v81 = vld [vmem:[#allocation7 + $0x8] sm:$0xff]
    %v82 = vshrl.u32 %v80, 9
    %v83 = vor.u32 %v82, 1065353216
    %v85 = vshrl.u32 %v81, 9
    %v86 = vor.u32 %v85, 1065353216
    %v88 = vsub.f32 2.0, %v83
    %v89 = vsub.f32 %v86, 1.0
    %v90 = vlog2.pop %v88
    %v91 = vmul.f32 %v90, 0.6931472
    %v92 = vmul.f32 %v91, -2.0
    %v93 = vrsqrt.pop %v92
    %v94 = vmul.f32 %v93, %v92
    %v95 = vmul.f32 %v94, %v93
    %v96 = vmul.f32 0.5, %v95
    %v97 = vsub.f32 1.5, %v96
    %v98 = vmul.f32 %v93, %v97
    %v99 = vmul.f32 %v92, %v98
    %vm100 = vcmp.eq.f32.partialorder %v92, inf
    %v101 = vsel %vm100, %v92, %v99
    %vm102 = vcmp.eq.f32.partialorder %v92, 0.0
    %v103 = vand.u32 %v92, 2147483648
    %v104 = vsel %vm102, %v103, %v101
    %v105 = vmul.f32 %v89, 6.2831855
    %v106 = vand.u32 2147483647, %v105
    %vm107 = vcmp.le.f32.partialorder %v106, 0.7853982
    %vm108 = vcmp.lt.s32.totalorder %v105, 0
    %v109 = vand.u32 %v105, 2139095040
    %v110 = vshrl.u32 %v109, 23
    %v111 = vsub.s32 %v110, 127
    %v112 = vand.u32 2147483647, %v105
    %v113 = vand.u32 %v112, 8388607
    %v114 = vor.u32 %v113, 8388608
    %v115 = vsub.s32 0, %v114
    %v116 = vadd.s32 %v111, 1
    %vm117 = vcmp.gt.s32.totalorder %v116, 0
    %v118 = vsel %vm117, %v116, 0
    %v119 = vshrl.u32 %v118, 5
    %v120 = vand.u32 %v118, 31
    %v121 = vsub.s32 32, %v120
    %v122 = vshrl.u32 683565275, %v121
    %v123 = vshll.u32 683565275, %v120
    %v124 = vshrl.u32 2475754826, %v121
    %v125 = vor.u32 %v123, %v124
    %v126 = vshll.u32 2475754826, %v120
    %v127 = vshrl.u32 2131351028, %v121
    %v128 = vor.u32 %v126, %v127
    %v129 = vshll.u32 2131351028, %v120
    %v130 = vshrl.u32 2102212464, %v121
    %v131 = vor.u32 %v129, %v130
    %v132 = vshll.u32 2102212464, %v120
    %v133 = vshrl.u32 920167782, %v121
    %v134 = vor.u32 %v132, %v133
    %v135 = vshll.u32 920167782, %v120
    %v136 = vshrl.u32 1326507024, %v121
    %v137 = vor.u32 %v135, %v136
    %vm138 = vcmp.lt.s32.totalorder %v119, 1
    %vm139 = vcmp.lt.s32.totalorder %v119, 2
    %vm140 = vcmp.lt.s32.totalorder %v119, 3
    %vm141 = vcmp.lt.s32.totalorder %v119, 4
    %v142 = vsel %vm138, %v122, %v125
    %v143 = vsel %vm141, %v131, 2102212464
    %v144 = vsel %vm140, %v128, %v143
    %v145 = vsel %vm139, %v142, %v144
    %v146 = vsel %vm138, %v125, %v128
    %v147 = vsel %vm141, %v134, 920167782
    %v148 = vsel %vm140, %v131, %v147
    %v149 = vsel %vm139, %v146, %v148
    %v150 = vsel %vm138, %v128, %v131
    %v151 = vsel %vm141, %v137, 1326507024
    %v152 = vsel %vm140, %v134, %v151
    %v153 = vsel %vm139, %v150, %v152
    %v154 = vshll.u32 %v114, 8
    %v155 = vand.u32 %v154, 65535
    %v156 = vshrl.u32 %v154, 16
    %v157 = vand.u32 %v153, 65535
    %v158 = vshrl.u32 %v153, 16
    %v159 = vmul.u32 %v155, %v157
    %v160 = vmul.u32 %v155, %v158
    %v161 = vmul.u32 %v156, %v157
    %v162 = vmul.u32 %v156, %v158
    %v163 = vshll.u32 %v160, 16
    %v164 = vshrl.u32 %v160, 16
    %v165 = vshll.u32 %v161, 16
    %v166 = vshrl.u32 %v161, 16
    %vm167 = vc.u32 %v159, %v163
    %v168 = vsel %vm167, 1, 0
    %v169 = vadd.s32 %v159, %v163
    %v170 = vadd.s32 %v162, %v168
    %vm171 = vc.u32 %v169, %v165
    %v172 = vsel %vm171, 1, 0
    %v173 = vadd.s32 %v169, %v165
    %v174 = vadd.s32 %v170, %v172
    %v175 = vadd.s32 %v174, %v164
    %v176 = vadd.s32 %v175, %v166
    %v177 = vand.u32 %v154, 65535
    %v178 = vshrl.u32 %v154, 16
    %v179 = vand.u32 %v149, 65535
    %v180 = vshrl.u32 %v149, 16
    %v181 = vmul.u32 %v177, %v179
    %v182 = vmul.u32 %v177, %v180
    %v183 = vmul.u32 %v178, %v179
    %v184 = vmul.u32 %v178, %v180
    %v185 = vshll.u32 %v182, 16
    %v186 = vshrl.u32 %v182, 16
    %v187 = vshll.u32 %v183, 16
    %v188 = vshrl.u32 %v183, 16
    %vm189 = vc.u32 %v181, %v185
    %v190 = vsel %vm189, 1, 0
    %v191 = vadd.s32 %v181, %v185
    %v192 = vadd.s32 %v184, %v190
    %vm193 = vc.u32 %v191, %v187
    %v194 = vsel %vm193, 1, 0
    %v195 = vadd.s32 %v191, %v187
    %v196 = vadd.s32 %v192, %v194
    %v197 = vadd.s32 %v196, %v186
    %v198 = vadd.s32 %v197, %v188
    %v199 = vmul.u32 %v154, %v145
    %v200 = vadd.s32 %v176, %v195
    %vm201 = vc.u32 %v176, %v195
    %v202 = vadd.s32 %v198, 1
    %v203 = vsel %vm201, %v202, %v198
    %v204 = vadd.s32 %v199, %v203
    %v205 = vadd.s32 %v204, 536870912
    %v206 = vshrl.u32 %v205, 30
    %v207 = vshll.u32 %v206, 30
    %v208 = vsub.s32 %v204, %v207
    %vm209 = vcmp.lt.s32.totalorder %v208, 0
    %v210 = vsub.s32 0, %v208
    %v211 = vsel %vm209, %v210, %v208
    %v212 = vclz %v211
    %v213 = vsub.s32 %v212, 2
    %vm214 = vcmp.gt.s32.totalorder 0, %v213
    %v215 = vsel %vm214, 0, %v213
    %v216 = vsub.s32 32, %v215
    %v217 = vshll.u32 %v208, %v215
    %v218 = vshrl.u32 %v200, %v216
    %v219 = vor.u32 %v217, %v218
    %v220 = vsub.s32 4294967266, %v215
    %v221 = vadd.s32 %v220, 127
    %v222 = vshll.u32 %v221, 23
    %v223 = vor.u32 4788187, %v222
    %v224 = vand.u32 2147483647, %v223
    %v226 = vcvt.s32.f32 %v219
    %v227 = vmul.f32 %v226, %v224
    %v228 = vxor.u32 %v227, 2147483648
    %v229 = vsel %vm108, %v228, %v227
    %v230 = vsub.s32 4, %v206
    %v231 = vsel %vm108, %v230, %v206
    %v232 = vsel %vm107, %v105, %v229
    %v233 = vsel %vm107, 0, %v231
    %v234 = vmul.f32 %v232, %v232
    %v235 = vmul.f32 %v234, -0.001358992
    %v236 = vadd.f32 %v235, 0.041655596
    %v237 = vmul.f32 %v234, %v236
    %v238 = vadd.f32 %v237, -0.4999988
    %v239 = vmul.f32 %v234, %v238
    %v240 = vadd.f32 1.0, %v239
    %v241 = vmul.f32 %v232, %v232
    %v242 = vmul.f32 %v241, -0.00019511016
    %v243 = vadd.f32 %v242, 0.008332121
    %v244 = vmul.f32 %v241, %v243
    %v245 = vadd.f32 %v244, -0.16666654
    %v246 = vmul.f32 %v241, %v245
    %v247 = vadd.f32 %v246, 1.0
    %v248 = vmul.f32 %v247, %v232
    %vm249 = vweird.f32 %v105
    %v250 = vand.u32 %v233, 3
    %vm251 = vcmp.lt.s32.totalorder %v250, 2
    %vm252 = vcmp.eq.s32.totalorder %v250, 0
    %v253 = vxor.u32 %v248, 2147483648
    %v254 = vsel %vm252, %v240, %v253
    %vm255 = vcmp.eq.s32.totalorder %v250, 2
    %v256 = vxor.u32 %v240, 2147483648
    %v257 = vsel %vm255, %v256, %v248
    %v258 = vsel %vm251, %v254, %v257
    %v259 = vsel %vm249, nan, %v258
    %v260 = vmul.f32 %v104, %v259
    %v261 = vand.u32 2147483647, %v105
    %vm262 = vcmp.le.f32.partialorder %v261, 0.7853982
    %vm263 = vcmp.lt.s32.totalorder %v105, 0
    %v264 = vand.u32 %v105, 2139095040
    %v265 = vshrl.u32 %v264, 23
    %v266 = vsub.s32 %v265, 127
    %v267 = vand.u32 2147483647, %v105
    %v268 = vand.u32 %v267, 8388607
    %v269 = vor.u32 %v268, 8388608
    %v270 = vsub.s32 0, %v269
    %v271 = vadd.s32 %v266, 1
    %vm272 = vcmp.gt.s32.totalorder %v271, 0
    %v273 = vsel %vm272, %v271, 0
    %v274 = vshrl.u32 %v273, 5
    %v275 = vand.u32 %v273, 31
    %v276 = vsub.s32 32, %v275
    %v277 = vshrl.u32 683565275, %v276
    %v278 = vshll.u32 683565275, %v275
    %v279 = vshrl.u32 2475754826, %v276
    %v280 = vor.u32 %v278, %v279
    %v281 = vshll.u32 2475754826, %v275
    %v282 = vshrl.u32 2131351028, %v276
    %v283 = vor.u32 %v281, %v282
    %v284 = vshll.u32 2131351028, %v275
    %v285 = vshrl.u32 2102212464, %v276
    %v286 = vor.u32 %v284, %v285
    %v287 = vshll.u32 2102212464, %v275
    %v288 = vshrl.u32 920167782, %v276
    %v289 = vor.u32 %v287, %v288
    %v290 = vshll.u32 920167782, %v275
    %v291 = vshrl.u32 1326507024, %v276
    %v292 = vor.u32 %v290, %v291
    %vm293 = vcmp.lt.s32.totalorder %v274, 1
    %vm294 = vcmp.lt.s32.totalorder %v274, 2
    %vm295 = vcmp.lt.s32.totalorder %v274, 3
    %vm296 = vcmp.lt.s32.totalorder %v274, 4
    %v297 = vsel %vm293, %v277, %v280
    %v298 = vsel %vm296, %v286, 2102212464
    %v299 = vsel %vm295, %v283, %v298
    %v300 = vsel %vm294, %v297, %v299
    %v301 = vsel %vm293, %v280, %v283
    %v302 = vsel %vm296, %v289, 920167782
    %v303 = vsel %vm295, %v286, %v302
    %v304 = vsel %vm294, %v301, %v303
    %v305 = vsel %vm293, %v283, %v286
    %v306 = vsel %vm296, %v292, 1326507024
    %v307 = vsel %vm295, %v289, %v306
    %v308 = vsel %vm294, %v305, %v307
    %v309 = vshll.u32 %v269, 8
    %v310 = vand.u32 %v309, 65535
    %v311 = vshrl.u32 %v309, 16
    %v312 = vand.u32 %v308, 65535
    %v313 = vshrl.u32 %v308, 16
    %v314 = vmul.u32 %v310, %v312
    %v315 = vmul.u32 %v310, %v313
    %v316 = vmul.u32 %v311, %v312
    %v317 = vmul.u32 %v311, %v313
    %v318 = vshll.u32 %v315, 16
    %v319 = vshrl.u32 %v315, 16
    %v320 = vshll.u32 %v316, 16
    %v321 = vshrl.u32 %v316, 16
    %vm322 = vc.u32 %v314, %v318
    %v323 = vsel %vm322, 1, 0
    %v324 = vadd.s32 %v314, %v318
    %v325 = vadd.s32 %v317, %v323
    %vm326 = vc.u32 %v324, %v320
    %v327 = vsel %vm326, 1, 0
    %v328 = vadd.s32 %v324, %v320
    %v329 = vadd.s32 %v325, %v327
    %v330 = vadd.s32 %v329, %v319
    %v331 = vadd.s32 %v330, %v321
    %v332 = vand.u32 %v309, 65535
    %v333 = vshrl.u32 %v309, 16
    %v334 = vand.u32 %v304, 65535
    %v335 = vshrl.u32 %v304, 16
    %v336 = vmul.u32 %v332, %v334
    %v337 = vmul.u32 %v332, %v335
    %v338 = vmul.u32 %v333, %v334
    %v339 = vmul.u32 %v333, %v335
    %v340 = vshll.u32 %v337, 16
    %v341 = vshrl.u32 %v337, 16
    %v342 = vshll.u32 %v338, 16
    %v343 = vshrl.u32 %v338, 16
    %vm344 = vc.u32 %v336, %v340
    %v345 = vsel %vm344, 1, 0
    %v346 = vadd.s32 %v336, %v340
    %v347 = vadd.s32 %v339, %v345
    %vm348 = vc.u32 %v346, %v342
    %v349 = vsel %vm348, 1, 0
    %v350 = vadd.s32 %v346, %v342
    %v351 = vadd.s32 %v347, %v349
    %v352 = vadd.s32 %v351, %v341
    %v353 = vadd.s32 %v352, %v343
    %v354 = vmul.u32 %v309, %v300
    %v355 = vadd.s32 %v331, %v350
    %vm356 = vc.u32 %v331, %v350
    %v357 = vadd.s32 %v353, 1
    %v358 = vsel %vm356, %v357, %v353
    %v359 = vadd.s32 %v354, %v358
    %v360 = vadd.s32 %v359, 536870912
    %v361 = vshrl.u32 %v360, 30
    %v362 = vshll.u32 %v361, 30
    %v363 = vsub.s32 %v359, %v362
    %vm364 = vcmp.lt.s32.totalorder %v363, 0
    %v365 = vsub.s32 0, %v363
    %v366 = vsel %vm364, %v365, %v363
    %v367 = vclz %v366
    %v368 = vsub.s32 %v367, 2
    %vm369 = vcmp.gt.s32.totalorder 0, %v368
    %v370 = vsel %vm369, 0, %v368
    %v371 = vsub.s32 32, %v370
    %v372 = vshll.u32 %v363, %v370
    %v373 = vshrl.u32 %v355, %v371
    %v374 = vor.u32 %v372, %v373
    %v375 = vsub.s32 4294967266, %v370
    %v376 = vadd.s32 %v375, 127
    %v377 = vshll.u32 %v376, 23
    %v378 = vor.u32 4788187, %v377
    %v379 = vand.u32 2147483647, %v378
    %v381 = vcvt.s32.f32 %v374
    %v382 = vmul.f32 %v381, %v379
    %v383 = vxor.u32 %v382, 2147483648
    %v384 = vsel %vm263, %v383, %v382
    %v385 = vsub.s32 4, %v361
    %v386 = vsel %vm263, %v385, %v361
    %v387 = vsel %vm262, %v105, %v384
    %v388 = vsel %vm262, 0, %v386
    %v389 = vmul.f32 %v387, %v387
    %v390 = vmul.f32 %v389, -0.001358992
    %v391 = vadd.f32 %v390, 0.041655596
    %v392 = vmul.f32 %v389, %v391
    %v393 = vadd.f32 %v392, -0.4999988
    %v394 = vmul.f32 %v389, %v393
    %v395 = vadd.f32 1.0, %v394
    %v396 = vmul.f32 %v387, %v387
    %v397 = vmul.f32 %v396, -0.00019511016
    %v398 = vadd.f32 %v397, 0.008332121
    %v399 = vmul.f32 %v396, %v398
    %v400 = vadd.f32 %v399, -0.16666654
    %v401 = vmul.f32 %v396, %v400
    %v402 = vadd.f32 %v401, 1.0
    %v403 = vmul.f32 %v402, %v387
    %vm404 = vweird.f32 %v105
    %v405 = vadd.s32 %v388, 3
    %v406 = vand.u32 %v405, 3
    %vm407 = vcmp.lt.s32.totalorder %v406, 2
    %vm408 = vcmp.eq.s32.totalorder %v406, 0
    %v409 = vxor.u32 %v403, 2147483648
    %v410 = vsel %vm408, %v395, %v409
    %vm411 = vcmp.eq.s32.totalorder %v406, 2
    %v412 = vxor.u32 %v395, 2147483648
    %v413 = vsel %vm411, %v412, %v403
    %v414 = vsel %vm407, %v410, %v413
    %v415 = vsel %vm404, nan, %v414
    %v416 = vmul.f32 %v104, %v415
    %417 = vmatpush.msra.mxu0 %v79
    %418 = vmatpush.msra.mxu0 %v78
    %419 = vmatpush.msra.mxu0 %v77
    %420 = vmatpush.msra.mxu0 %v76
    %421 = vmatpush.msra.mxu0 %v75
    %422 = vmatpush.msra.mxu0 %v74
    %423 = vmatpush.msra.mxu0 %v73
    %424 = vmatpush.msra.mxu0 %v72
    %425 = vmatpush.msra.mxu0 %v71
    %426 = vmatpush.msra.mxu0 %v70
    %427 = vmatpush.msra.mxu0 %v69
    %428 = vmatpush.msra.mxu0 %v68
    %429 = vmatpush.msra.mxu0 %v67
    %430 = vmatpush.msra.mxu0 %v66
    %431 = vmatpush.msra.mxu0 %v65
    %432 = vmatpush.msra.mxu0 %v64
    %433 = vmatmul.f32.gmra.mxu0 %v62
    %v434 = vpop.f32.mrf.mxu0
    %v435 = vadd.f32 %v260, %v434
    %436 = vmatmul.f32.gmra.mxu0 %v63
    %v437 = vpop.f32.mrf.mxu0
    %v438 = vadd.f32 %v416, %v437
    %439 = vdwg.mxu0
    %440 = vst [vmem:[#allocation8] sm:$0xff] %v435
    %441 = vst [vmem:[#allocation8 + $0x8] sm:$0xff] %v438
    // Predicated region
    $region26: #{tpu_custom_call.1} parent=1 // pred_check
      _
    $region27: #{tpu_custom_call.1} parent=1 // pred_check_branch
      %443 = sbr.rel (0) target = $region29
    $region28: #{tpu_custom_call.1} parent=1 // pred_region
      %445 = vsyncadd [#allocation4], 0
      %s446 = sshll.u32 [#allocation8], 4
      %s447 = int_to_ptr.vmem [resolvable:$true] %s446
      %s448 = sshll.u32 %s3, 4
      %s449 = int_to_ptr.hbm [resolvable:$true] %s448
      %454 = dma.vmem_to_hbm [thread:$0]  %s447, 256, %s449, [#allocation4], 128, 128, 8
    $region29: #{tpu_custom_call.1} parent=1 // pred_fallthru
      _
    // Predicated region
    $region30: #{tpu_custom_call.1} parent=1 // pred_check
      _
    $region31: #{tpu_custom_call.1} parent=1 // pred_check_branch
      %456 = sbr.rel (0) target = $region33
    $region32: #{tpu_custom_call.1} parent=1 // pred_region
      %458 = dma.done [#allocation4], 256
    $region33: #{tpu_custom_call.1} parent=1 // pred_fallthru
      _
    %459 = vsyncpa [#allocation3], 1
    %460 = vsyncpa [#allocation6], 1
    %461 = vsyncpa [#allocation4], 1

</llo_original>
